<compile_context>
chip_gen: v7x
topology: tpu7x:2x2x1
jax: 0.10.0
libtpu: 0.0.40
codegen_flags: <defaults>
</compile_context>

<pallas_src>
import functools

import jax
import jax.numpy as jnp
from jax.experimental import pallas as pl
from jax.experimental.pallas import tpu as pltpu

_BN_EPS = 1e-5  # PyTorch BatchNorm1d default


# ---------------------------------------------------------------------------
# In-kernel helper: Conv1d with 'same' padding (odd K), via im2col + one MXU matmul.
#   x_ref : (1, C_in, L)          w_ref : (C_out, K*C_in)  (tap-major: col = dk*C_in + ci)
#   b_ref : (C_out, 1)            xbuf  : (C_in, L + 2P)   pbuf : (K*C_in, L)
# Returns the (C_out, L) f32 conv output (as a value, stays in VMEM/vregs).
# ---------------------------------------------------------------------------
def _conv1_im2col(x_ref, w_ref, b_ref, xbuf, pbuf, *, K, P, L):
    c_in = x_ref.shape[1]
    # zero halo = the 'same' zero padding, done in-kernel (no HBM jnp.pad copy)
    xbuf[...] = jnp.zeros(xbuf.shape, xbuf.dtype)
    xbuf[:, P:P + L] = x_ref[0]
    # im2col: K lane-shifted copies stacked along sublanes -> one big-contraction matmul
    for dk in range(K):
        pbuf[dk * c_in:(dk + 1) * c_in, :] = xbuf[:, dk:dk + L]
    return jnp.dot(w_ref[...], pbuf[...], preferred_element_type=jnp.float32) + b_ref[...]


# ---------------------------------------------------------------------------
# Fused kernel for scale_factor == 2 (one batch element per grid step):
#   conv1 -> (nearest x2, implicit) -> conv2 (polyphase) -> per-batch BN partial stats.
# Outputs:
#   y2_ref    : (1, 2, C_out, L)   even/odd output phases (y2[..., r, c, t] == y2_full[c, 2t+r])
#   stats_ref : (1, C_out, 2)      [:, :, 0] = sum, [:, :, 1] = sum of squares (over 2L positions)
# ---------------------------------------------------------------------------
def _fused_up2_kernel(x_ref, w1_ref, b1_ref, w2p_ref,
                      y2_ref, stats_ref,
                      xbuf, p1buf, y1buf, p2buf,
                      *, K, P, H, Keff, jmins, L):
    c_out = w1_ref.shape[0]

    # ---- conv1 ----
    y1 = _conv1_im2col(x_ref, w1_ref, b1_ref, xbuf, p1buf, K=K, P=P, L=L)

    # Zero-extended copy of y1 with halo H on each side.  Positions outside [0, L)
    # must read as zero (that is exactly conv2's zero padding on the upsampled signal).
    y1buf[...] = jnp.zeros(y1buf.shape, y1buf.dtype)
    y1buf[:, H:H + L] = y1

    # ---- conv2 on the x2-nearest-upsampled signal, polyphase ----
    # y2[c, 2t+r] = sum_jj w2p[r, c, jj*C_out+cm] * y1[cm, t + jmin_r + jj]
    # (w2p pre-combines the two conv2 taps that hit the same duplicated y1 sample).
    ssum = jnp.zeros((c_out, 1), jnp.float32)
    ssq = jnp.zeros((c_out, 1), jnp.float32)
    for r in range(2):
        base = H + jmins[r]
        for jj in range(Keff):
            off = base + jj
            p2buf[jj * c_out:(jj + 1) * c_out, :] = y1buf[:, off:off + L]
        y2r = jnp.dot(w2p_ref[r], p2buf[...], preferred_element_type=jnp.float32)
        y2_ref[0, r] = y2r
        ssum = ssum + jnp.sum(y2r, axis=1, keepdims=True)
        ssq = ssq + jnp.sum(y2r * y2r, axis=1, keepdims=True)

    # per-batch BatchNorm partial statistics (reduced over batch by the wrapper)
    stats_ref[0, :, 0:1] = ssum
    stats_ref[0, :, 1:2] = ssq


def _fused_conv_up2_conv(x, w1, b1, w2):
    """x: (B, C_in, L) -> (y2_phases (B, 2, C_out, L), stats (B, C_out, 2))."""
    B, c_in, L = x.shape
    c_out, _, K = w1.shape
    # TODO(synk): even kernel sizes (PyTorch output length L+1) are not supported by the fused path.
    assert K % 2 == 1, "fused kernel requires an odd Conv1d kernel size"
    P = K // 2
    H = (P + 1) // 2              # y1 halo needed by the polyphase conv2
    Keff = P + 1                  # taps per output phase after combining duplicated samples
    jmins = ((0 - P) // 2, (1 - P) // 2)

    # Host-side weight massaging (tiny; runs once per jit trace / call).
    w1_2d = w1.transpose(0, 2, 1).reshape(c_out, K * c_in)     # col = dk*C_in + ci
    b1_2d = b1.reshape(c_out, 1)
    # Polyphase tap combination: taps of w2 that multiply the same (duplicated) y1 sample
    # for a given output phase are pre-summed -> effective kernel length Keff per phase.
    w2p = jnp.zeros((2, c_out, Keff, c_out), jnp.float32)
    for r in range(2):
        for dk in range(K):
            jj = (r + dk - P) // 2 - jmins[r]
            assert 0 <= jj < Keff
            w2p = w2p.at[r, :, jj, :].add(w2[:, :, dk])
    w2p_2d = w2p.reshape(2, c_out, Keff * c_out)               # col = jj*C_out + cm

    kern = functools.partial(_fused_up2_kernel, K=K, P=P, H=H, Keff=Keff, jmins=jmins, L=L)
    # NOTE: for very large L the length axis should additionally be tiled (halo'd L-tiles);
    # for moderate L one batch row of x / y1 / y2 easily fits VMEM.
    return pl.pallas_call(
        kern,
        out_shape=(jax.ShapeDtypeStruct((B, 2, c_out, L), jnp.float32),
                   jax.ShapeDtypeStruct((B, c_out, 2), jnp.float32)),
        grid=(B,),
        in_specs=[
            pl.BlockSpec((1, c_in, L), lambda b: (b, 0, 0)),
            pl.BlockSpec((c_out, K * c_in), lambda b: (0, 0)),
            pl.BlockSpec((c_out, 1), lambda b: (0, 0)),
            pl.BlockSpec((2, c_out, Keff * c_out), lambda b: (0, 0, 0)),
        ],
        out_specs=(
            pl.BlockSpec((1, 2, c_out, L), lambda b: (b, 0, 0, 0)),
            pl.BlockSpec((1, c_out, 2), lambda b: (b, 0, 0)),
        ),
        scratch_shapes=[
            pltpu.VMEM((c_in, L + 2 * P), jnp.float32),        # padded x
            pltpu.VMEM((K * c_in, L), jnp.float32),            # conv1 im2col patch
            pltpu.VMEM((c_out, L + 2 * H), jnp.float32),       # zero-extended conv1 output
            pltpu.VMEM((Keff * c_out, L), jnp.float32),        # conv2 polyphase patch
        ],
        compiler_params=pltpu.CompilerParams(dimension_semantics=("parallel",)),
    )(x, w1_2d, b1_2d, w2p_2d)


# ---------------------------------------------------------------------------
# Fused kernel for the scale_factor == 1 branch of the module: conv1 + BN partial stats.
# ---------------------------------------------------------------------------
def _conv_stats_kernel(x_ref, w1_ref, b1_ref, y_ref, stats_ref, xbuf, p1buf, *, K, P, L):
    y1 = _conv1_im2col(x_ref, w1_ref, b1_ref, xbuf, p1buf, K=K, P=P, L=L)
    y_ref[0] = y1
    stats_ref[0, :, 0:1] = jnp.sum(y1, axis=1, keepdims=True)
    stats_ref[0, :, 1:2] = jnp.sum(y1 * y1, axis=1, keepdims=True)


def _fused_conv_stats(x, w1, b1):
    B, c_in, L = x.shape
    c_out, _, K = w1.shape
    assert K % 2 == 1, "fused kernel requires an odd Conv1d kernel size"
    P = K // 2
    w1_2d = w1.transpose(0, 2, 1).reshape(c_out, K * c_in)
    b1_2d = b1.reshape(c_out, 1)
    kern = functools.partial(_conv_stats_kernel, K=K, P=P, L=L)
    return pl.pallas_call(
        kern,
        out_shape=(jax.ShapeDtypeStruct((B, c_out, L), jnp.float32),
                   jax.ShapeDtypeStruct((B, c_out, 2), jnp.float32)),
        grid=(B,),
        in_specs=[
            pl.BlockSpec((1, c_in, L), lambda b: (b, 0, 0)),
            pl.BlockSpec((c_out, K * c_in), lambda b: (0, 0)),
            pl.BlockSpec((c_out, 1), lambda b: (0, 0)),
        ],
        out_specs=(
            pl.BlockSpec((1, c_out, L), lambda b: (b, 0, 0)),
            pl.BlockSpec((1, c_out, 2), lambda b: (b, 0, 0)),
        ),
        scratch_shapes=[
            pltpu.VMEM((c_in, L + 2 * P), jnp.float32),
            pltpu.VMEM((K * c_in, L), jnp.float32),
        ],
        compiler_params=pltpu.CompilerParams(dimension_semantics=("parallel",)),
    )(x, w1_2d, b1_2d)


# ---------------------------------------------------------------------------
# Parameters & forward pass.
# ---------------------------------------------------------------------------
def init_params(key, in_f, out_f, kernel):
    k1, k2, k3, k4 = jax.random.split(key, 4)
    s1 = 1.0 / (in_f * kernel) ** 0.5
    s2 = 1.0 / (out_f * kernel) ** 0.5
    return {
        "w1": jax.random.uniform(k1, (out_f, in_f, kernel), jnp.float32, -s1, s1),
        "b1": jax.random.uniform(k2, (out_f,), jnp.float32, -s1, s1),
        "w2": jax.random.uniform(k3, (out_f, out_f, kernel), jnp.float32, -s2, s2),
        "b2": jax.random.uniform(k4, (out_f,), jnp.float32, -s2, s2),
        "gamma": jnp.ones((out_f,), jnp.float32),
        "beta": jnp.zeros((out_f,), jnp.float32),
    }


def _bn_affine(stats, gamma, beta, n):
    """Per-channel scale/shift of training-mode BatchNorm from (sum, sumsq) partials."""
    s = jnp.sum(stats[:, :, 0], axis=0)
    ss = jnp.sum(stats[:, :, 1], axis=0)
    mean = s / n
    var = ss / n - mean * mean                  # biased variance
    scale = gamma * jax.lax.rsqrt(var + _BN_EPS)
    shift = beta - mean * scale
    return scale, shift


@functools.partial(jax.jit, static_argnames=("scale_factor",))
def upsample_forward(x, params, scale_factor=2):
    """x: (B, in_f, L) float32 -> (B, out_f, L*scale_factor) float32."""
    if scale_factor == 2:
        # NOTE: conv2's bias is intentionally dropped: a per-channel constant added right
        # before a training-mode BatchNorm is exactly cancelled by the mean subtraction.
        y2p, stats = _fused_conv_up2_conv(x, params["w1"], params["b1"], params["w2"])
        B, _, c_out, L = y2p.shape
        scale, shift = _bn_affine(stats, params["gamma"], params["beta"], B * 2 * L)
        y = y2p * scale[None, None, :, None] + shift[None, None, :, None]
        # TODO(synk): the even/odd phase interleave has no clean lane-interleaved store in Mosaic;
        # it runs here as one fused XLA affine+transpose+reshape pass (the single, unavoidable
        # read-back of the conv2 output required by two-pass BatchNorm).
        return y.transpose(0, 2, 3, 1).reshape(B, c_out, 2 * L)
    elif scale_factor == 1:
        y, stats = _fused_conv_stats(x, params["w1"], params["b1"])
        B, c_out, L = y.shape
        scale, shift = _bn_affine(stats, params["gamma"], params["beta"], B * L)
        return y * scale[None, :, None] + shift[None, :, None]
    else:
        # TODO(synk): nearest upsample factors other than 1 or 2 are not implemented.
        raise NotImplementedError("scale_factor must be 1 or 2")


# ---------------------------------------------------------------------------
# Pure-JAX reference (mirrors the PyTorch module forward) for self-checking.
# ---------------------------------------------------------------------------
def upsample_reference(x, params, scale_factor=2):
    dn = ("NCH", "OIH", "NCH")
    P1 = params["w1"].shape[2] // 2
    y = jax.lax.conv_general_dilated(
        x, params["w1"], (1,), [(P1, P1)], dimension_numbers=dn,
        precision=jax.lax.Precision.HIGHEST) + params["b1"][None, :, None]
    if scale_factor > 1:
        y = jnp.repeat(y, scale_factor, axis=-1)
        P2 = params["w2"].shape[2] // 2
        y = jax.lax.conv_general_dilated(
            y, params["w2"], (1,), [(P2, P2)], dimension_numbers=dn,
            precision=jax.lax.Precision.HIGHEST) + params["b2"][None, :, None]
    mean = jnp.mean(y, axis=(0, 2), keepdims=True)
    var = jnp.mean((y - mean) ** 2, axis=(0, 2), keepdims=True)
    return ((y - mean) * jax.lax.rsqrt(var + _BN_EPS)
            * params["gamma"][None, :, None] + params["beta"][None, :, None])


if __name__ == "__main__":
    B, in_f, out_f, kernel, L, scale = 2, 4, 8, 3, 16, 2
    key = jax.random.PRNGKey(0)
    kp, kx = jax.random.split(key)
    params = init_params(kp, in_f, out_f, kernel)
    x = jax.random.normal(kx, (B, in_f, L), jnp.float32)

    out = jax.block_until_ready(upsample_forward(x, params, scale_factor=scale))
    assert out.shape == (B, out_f, L * scale), out.shape
    ref = upsample_reference(x, params, scale_factor=scale)
    err = float(jnp.max(jnp.abs(out - ref)))
    assert jnp.allclose(out, ref, rtol=1e-4, atol=1e-4), err

    # also exercise the scale_factor == 1 branch of the module
    out1 = jax.block_until_ready(upsample_forward(x, params, scale_factor=1))
    assert out1.shape == (B, out_f, L), out1.shape
    ref1 = upsample_reference(x, params, scale_factor=1)
    err1 = float(jnp.max(jnp.abs(out1 - ref1)))
    assert jnp.allclose(out1, ref1, rtol=1e-4, atol=1e-4), err1

    print("KERNEL_OK")
</pallas_src>

<mosaic_0001>
module attributes {stable_mosaic.version = 11 : i64} {
  func.func @_fused_up2_kernel(%arg0: i32, %arg1: memref<1x4x16xf32, #tpu.memory_space<vmem>>, %arg2: memref<8x12xf32, #tpu.memory_space<vmem>>, %arg3: memref<8x1xf32, #tpu.memory_space<vmem>>, %arg4: memref<2x8x16xf32, #tpu.memory_space<vmem>>, %arg5: memref<1x2x8x16xf32, #tpu.memory_space<vmem>>, %arg6: memref<1x8x2xf32, #tpu.memory_space<vmem>>, %arg7: memref<4x18xf32, #tpu.memory_space<vmem>>, %arg8: memref<12x16xf32, #tpu.memory_space<vmem>>, %arg9: memref<8x18xf32, #tpu.memory_space<vmem>>, %arg10: memref<16x16xf32, #tpu.memory_space<vmem>>) attributes {dimension_semantics = [#tpu.dimension_semantics<parallel>], iteration_bounds = array<i64: 2>, scalar_prefetch = 0 : i64, scratch_operands = 4 : i64, tpu.core_type = #tpu.core_type<tc>, window_params = [{transform_indices = @transform_0, window_bounds = array<i64: 1, 4, 16>}, {pipeline_mode = #tpu.pipeline_mode<synchronous>, transform_indices = @transform_1, window_bounds = array<i64: 8, 12>}, {pipeline_mode = #tpu.pipeline_mode<synchronous>, transform_indices = @transform_2, window_bounds = array<i64: 8, 1>}, {pipeline_mode = #tpu.pipeline_mode<synchronous>, transform_indices = @transform_3, window_bounds = array<i64: 2, 8, 16>}, {transform_indices = @transform_4, window_bounds = array<i64: 1, 2, 8, 16>}, {transform_indices = @transform_5, window_bounds = array<i64: 1, 8, 2>}]} {
    %cst = arith.constant 0.000000e+00 : f32
    %0 = vector.broadcast %cst : f32 to vector<4x18xf32>
    %c0 = arith.constant 0 : index
    %c0_0 = arith.constant 0 : index
    %1 = vector.load %arg7[%c0, %c0_0] : memref<4x18xf32, #tpu.memory_space<vmem>>, vector<4x18xf32>
    tpu.vector_store %arg7[%c0, %c0_0], %0 {strides = array<i32>} : memref<4x18xf32, #tpu.memory_space<vmem>>, vector<4x18xf32>,
    %c0_1 = arith.constant 0 : index
    %c0_2 = arith.constant 0 : index
    %c0_3 = arith.constant 0 : index
    %2 = vector.load %arg1[%c0_1, %c0_2, %c0_3] : memref<1x4x16xf32, #tpu.memory_space<vmem>>, vector<1x4x16xf32>
    %3 = vector.shape_cast %2 : vector<1x4x16xf32> to vector<4x16xf32>
    %c0_4 = arith.constant 0 : index
    %c1 = arith.constant 1 : index
    %4 = vector.load %arg7[%c0_4, %c1] : memref<4x18xf32, #tpu.memory_space<vmem>>, vector<4x16xf32>
    tpu.vector_store %arg7[%c0_4, %c1], %3 {strides = array<i32>} : memref<4x18xf32, #tpu.memory_space<vmem>>, vector<4x16xf32>,
    %c0_5 = arith.constant 0 : index
    %c0_6 = arith.constant 0 : index
    %5 = vector.load %arg7[%c0_5, %c0_6] : memref<4x18xf32, #tpu.memory_space<vmem>>, vector<4x16xf32>
    %c0_7 = arith.constant 0 : index
    %c0_8 = arith.constant 0 : index
    %6 = vector.load %arg8[%c0_7, %c0_8] : memref<12x16xf32, #tpu.memory_space<vmem>>, vector<4x16xf32>
    tpu.vector_store %arg8[%c0_7, %c0_8], %5 {strides = array<i32>} : memref<12x16xf32, #tpu.memory_space<vmem>>, vector<4x16xf32>,
    %c0_9 = arith.constant 0 : index
    %c1_10 = arith.constant 1 : index
    %7 = vector.load %arg7[%c0_9, %c1_10] : memref<4x18xf32, #tpu.memory_space<vmem>>, vector<4x16xf32>
    %c4 = arith.constant 4 : index
    %c0_11 = arith.constant 0 : index
    %8 = vector.load %arg8[%c4, %c0_11] : memref<12x16xf32, #tpu.memory_space<vmem>>, vector<4x16xf32>
    tpu.vector_store %arg8[%c4, %c0_11], %7 {strides = array<i32>} : memref<12x16xf32, #tpu.memory_space<vmem>>, vector<4x16xf32>,
    %c0_12 = arith.constant 0 : index
    %c2 = arith.constant 2 : index
    %9 = vector.load %arg7[%c0_12, %c2] : memref<4x18xf32, #tpu.memory_space<vmem>>, vector<4x16xf32>
    %c8 = arith.constant 8 : index
    %c0_13 = arith.constant 0 : index
    %10 = vector.load %arg8[%c8, %c0_13] : memref<12x16xf32, #tpu.memory_space<vmem>>, vector<4x16xf32>
    tpu.vector_store %arg8[%c8, %c0_13], %9 {strides = array<i32>} : memref<12x16xf32, #tpu.memory_space<vmem>>, vector<4x16xf32>,
    %c0_14 = arith.constant 0 : index
    %c0_15 = arith.constant 0 : index
    %11 = vector.load %arg2[%c0_14, %c0_15] : memref<8x12xf32, #tpu.memory_space<vmem>>, vector<8x12xf32>
    %c0_16 = arith.constant 0 : index
    %c0_17 = arith.constant 0 : index
    %12 = vector.load %arg8[%c0_16, %c0_17] : memref<12x16xf32, #tpu.memory_space<vmem>>, vector<12x16xf32>
    %cst_18 = arith.constant dense<0.000000e+00> : vector<8x16xf32>
    %13 = tpu.matmul %11, %12, %cst_18 {dimension_numbers = #tpu.dot_dimension_numbers<[1], [0], [0], [1], [0, 0, 1, 1], [], []>} : vector<8x12xf32>, vector<12x16xf32>, vector<8x16xf32> -> vector<8x16xf32>
    %c0_19 = arith.constant 0 : index
    %c0_20 = arith.constant 0 : index
    %14 = vector.load %arg3[%c0_19, %c0_20] : memref<8x1xf32, #tpu.memory_space<vmem>>, vector<8x1xf32>
    %15 = vector.broadcast %14 : vector<8x1xf32> to vector<8x16xf32>
    %16 = arith.addf %13, %15 : vector<8x16xf32>
    %cst_21 = arith.constant 0.000000e+00 : f32
    %17 = vector.broadcast %cst_21 : f32 to vector<8x18xf32>
    %c0_22 = arith.constant 0 : index
    %c0_23 = arith.constant 0 : index
    %18 = vector.load %arg9[%c0_22, %c0_23] : memref<8x18xf32, #tpu.memory_space<vmem>>, vector<8x18xf32>
    tpu.vector_store %arg9[%c0_22, %c0_23], %17 {strides = array<i32>} : memref<8x18xf32, #tpu.memory_space<vmem>>, vector<8x18xf32>,
    %c0_24 = arith.constant 0 : index
    %c1_25 = arith.constant 1 : index
    %19 = vector.load %arg9[%c0_24, %c1_25] : memref<8x18xf32, #tpu.memory_space<vmem>>, vector<8x16xf32>
    tpu.vector_store %arg9[%c0_24, %c1_25], %16 {strides = array<i32>} : memref<8x18xf32, #tpu.memory_space<vmem>>, vector<8x16xf32>,
    %cst_26 = arith.constant 0.000000e+00 : f32
    %20 = vector.broadcast %cst_26 : f32 to vector<8x1xf32>
    %cst_27 = arith.constant 0.000000e+00 : f32
    %21 = vector.broadcast %cst_27 : f32 to vector<8x1xf32>
    %c0_28 = arith.constant 0 : index
    %c0_29 = arith.constant 0 : index
    %22 = vector.load %arg9[%c0_28, %c0_29] : memref<8x18xf32, #tpu.memory_space<vmem>>, vector<8x16xf32>
    %c0_30 = arith.constant 0 : index
    %c0_31 = arith.constant 0 : index
    %23 = vector.load %arg10[%c0_30, %c0_31] : memref<16x16xf32, #tpu.memory_space<vmem>>, vector<8x16xf32>
    tpu.vector_store %arg10[%c0_30, %c0_31], %22 {strides = array<i32>} : memref<16x16xf32, #tpu.memory_space<vmem>>, vector<8x16xf32>,
    %c0_32 = arith.constant 0 : index
    %c1_33 = arith.constant 1 : index
    %24 = vector.load %arg9[%c0_32, %c1_33] : memref<8x18xf32, #tpu.memory_space<vmem>>, vector<8x16xf32>
    %c8_34 = arith.constant 8 : index
    %c0_35 = arith.constant 0 : index
    %25 = vector.load %arg10[%c8_34, %c0_35] : memref<16x16xf32, #tpu.memory_space<vmem>>, vector<8x16xf32>
    tpu.vector_store %arg10[%c8_34, %c0_35], %24 {strides = array<i32>} : memref<16x16xf32, #tpu.memory_space<vmem>>, vector<8x16xf32>,
    %c0_36 = arith.constant 0 : index
    %c0_37 = arith.constant 0 : index
    %c0_38 = arith.constant 0 : index
    %26 = vector.load %arg4[%c0_36, %c0_37, %c0_38] : memref<2x8x16xf32, #tpu.memory_space<vmem>>, vector<1x8x16xf32>
    %27 = vector.shape_cast %26 : vector<1x8x16xf32> to vector<8x16xf32>
    %c0_39 = arith.constant 0 : index
    %c0_40 = arith.constant 0 : index
    %28 = vector.load %arg10[%c0_39, %c0_40] : memref<16x16xf32, #tpu.memory_space<vmem>>, vector<16x16xf32>
    %cst_41 = arith.constant dense<0.000000e+00> : vector<8x16xf32>
    %29 = tpu.matmul %27, %28, %cst_41 {dimension_numbers = #tpu.dot_dimension_numbers<[1], [0], [0], [1], [0, 0, 1, 1], [], []>} : vector<8x16xf32>, vector<16x16xf32>, vector<8x16xf32> -> vector<8x16xf32>
    %c0_42 = arith.constant 0 : index
    %c0_43 = arith.constant 0 : index
    %c0_44 = arith.constant 0 : index
    %c0_45 = arith.constant 0 : index
    %30 = vector.load %arg5[%c0_42, %c0_43, %c0_44, %c0_45] : memref<1x2x8x16xf32, #tpu.memory_space<vmem>>, vector<1x1x8x16xf32>
    %31 = vector.shape_cast %30 : vector<1x1x8x16xf32> to vector<8x16xf32>
    %32 = vector.shape_cast %29 : vector<8x16xf32> to vector<1x1x8x16xf32>
    tpu.vector_store %arg5[%c0_42, %c0_43, %c0_44, %c0_45], %32 {strides = array<i32>} : memref<1x2x8x16xf32, #tpu.memory_space<vmem>>, vector<1x1x8x16xf32>,
    %cst_46 = arith.constant dense<0.000000e+00> : vector<8xf32>
    %33 = vector.multi_reduction <add>, %29, %cst_46 [1] : vector<8x16xf32> to vector<8xf32>
    %34 = vector.shape_cast %33 : vector<8xf32> to vector<8x1xf32>
    %35 = arith.addf %20, %34 : vector<8x1xf32>
    %36 = arith.mulf %29, %29 : vector<8x16xf32>
    %cst_47 = arith.constant dense<0.000000e+00> : vector<8xf32>
    %37 = vector.multi_reduction <add>, %36, %cst_47 [1] : vector<8x16xf32> to vector<8xf32>
    %38 = vector.shape_cast %37 : vector<8xf32> to vector<8x1xf32>
    %39 = arith.addf %21, %38 : vector<8x1xf32>
    %c0_48 = arith.constant 0 : index
    %c1_49 = arith.constant 1 : index
    %40 = vector.load %arg9[%c0_48, %c1_49] : memref<8x18xf32, #tpu.memory_space<vmem>>, vector<8x16xf32>
    %c0_50 = arith.constant 0 : index
    %c0_51 = arith.constant 0 : index
    %41 = vector.load %arg10[%c0_50, %c0_51] : memref<16x16xf32, #tpu.memory_space<vmem>>, vector<8x16xf32>
    tpu.vector_store %arg10[%c0_50, %c0_51], %40 {strides = array<i32>} : memref<16x16xf32, #tpu.memory_space<vmem>>, vector<8x16xf32>,
    %c0_52 = arith.constant 0 : index
    %c2_53 = arith.constant 2 : index
    %42 = vector.load %arg9[%c0_52, %c2_53] : memref<8x18xf32, #tpu.memory_space<vmem>>, vector<8x16xf32>
    %c8_54 = arith.constant 8 : index
    %c0_55 = arith.constant 0 : index
    %43 = vector.load %arg10[%c8_54, %c0_55] : memref<16x16xf32, #tpu.memory_space<vmem>>, vector<8x16xf32>
    tpu.vector_store %arg10[%c8_54, %c0_55], %42 {strides = array<i32>} : memref<16x16xf32, #tpu.memory_space<vmem>>, vector<8x16xf32>,
    %c1_56 = arith.constant 1 : index
    %c0_57 = arith.constant 0 : index
    %c0_58 = arith.constant 0 : index
    %44 = vector.load %arg4[%c1_56, %c0_57, %c0_58] : memref<2x8x16xf32, #tpu.memory_space<vmem>>, vector<1x8x16xf32>
    %45 = vector.shape_cast %44 : vector<1x8x16xf32> to vector<8x16xf32>
    %c0_59 = arith.constant 0 : index
    %c0_60 = arith.constant 0 : index
    %46 = vector.load %arg10[%c0_59, %c0_60] : memref<16x16xf32, #tpu.memory_space<vmem>>, vector<16x16xf32>
    %cst_61 = arith.constant dense<0.000000e+00> : vector<8x16xf32>
    %47 = tpu.matmul %45, %46, %cst_61 {dimension_numbers = #tpu.dot_dimension_numbers<[1], [0], [0], [1], [0, 0, 1, 1], [], []>} : vector<8x16xf32>, vector<16x16xf32>, vector<8x16xf32> -> vector<8x16xf32>
    %c0_62 = arith.constant 0 : index
    %c1_63 = arith.constant 1 : index
    %c0_64 = arith.constant 0 : index
    %c0_65 = arith.constant 0 : index
    %48 = vector.load %arg5[%c0_62, %c1_63, %c0_64, %c0_65] : memref<1x2x8x16xf32, #tpu.memory_space<vmem>>, vector<1x1x8x16xf32>
    %49 = vector.shape_cast %48 : vector<1x1x8x16xf32> to vector<8x16xf32>
    %50 = vector.shape_cast %47 : vector<8x16xf32> to vector<1x1x8x16xf32>
    tpu.vector_store %arg5[%c0_62, %c1_63, %c0_64, %c0_65], %50 {strides = array<i32>} : memref<1x2x8x16xf32, #tpu.memory_space<vmem>>, vector<1x1x8x16xf32>,
    %cst_66 = arith.constant dense<0.000000e+00> : vector<8xf32>
    %51 = vector.multi_reduction <add>, %47, %cst_66 [1] : vector<8x16xf32> to vector<8xf32>
    %52 = vector.shape_cast %51 : vector<8xf32> to vector<8x1xf32>
    %53 = arith.addf %35, %52 : vector<8x1xf32>
    %54 = arith.mulf %47, %47 : vector<8x16xf32>
    %cst_67 = arith.constant dense<0.000000e+00> : vector<8xf32>
    %55 = vector.multi_reduction <add>, %54, %cst_67 [1] : vector<8x16xf32> to vector<8xf32>
    %56 = vector.shape_cast %55 : vector<8xf32> to vector<8x1xf32>
    %57 = arith.addf %39, %56 : vector<8x1xf32>
    %c0_68 = arith.constant 0 : index
    %c0_69 = arith.constant 0 : index
    %c0_70 = arith.constant 0 : index
    %58 = vector.load %arg6[%c0_68, %c0_69, %c0_70] : memref<1x8x2xf32, #tpu.memory_space<vmem>>, vector<1x8x1xf32>
    %59 = vector.shape_cast %58 : vector<1x8x1xf32> to vector<8x1xf32>
    %60 = vector.shape_cast %53 : vector<8x1xf32> to vector<1x8x1xf32>
    tpu.vector_store %arg6[%c0_68, %c0_69, %c0_70], %60 {strides = array<i32>} : memref<1x8x2xf32, #tpu.memory_space<vmem>>, vector<1x8x1xf32>,
    %c0_71 = arith.constant 0 : index
    %c0_72 = arith.constant 0 : index
    %c1_73 = arith.constant 1 : index
    %61 = vector.load %arg6[%c0_71, %c0_72, %c1_73] : memref<1x8x2xf32, #tpu.memory_space<vmem>>, vector<1x8x1xf32>
    %62 = vector.shape_cast %61 : vector<1x8x1xf32> to vector<8x1xf32>
    %63 = vector.shape_cast %57 : vector<8x1xf32> to vector<1x8x1xf32>
    tpu.vector_store %arg6[%c0_71, %c0_72, %c1_73], %63 {strides = array<i32>} : memref<1x8x2xf32, #tpu.memory_space<vmem>>, vector<1x8x1xf32>,
    return
  }
  func.func @transform_0(%arg0: i32) -> (i32, i32, i32) {
    %c0_i32 = arith.constant 0 : i32
    %c0_i32_0 = arith.constant 0 : i32
    %c0_i32_1 = arith.constant 0 : i32
    return %arg0, %c0_i32, %c0_i32_0 : i32, i32, i32
  }
  func.func @transform_1(%arg0: i32) -> (i32, i32) {
    %c0_i32 = arith.constant 0 : i32
    %c0_i32_0 = arith.constant 0 : i32
    %c0_i32_1 = arith.constant 0 : i32
    return %c0_i32, %c0_i32_0 : i32, i32
  }
  func.func @transform_2(%arg0: i32) -> (i32, i32) {
    %c0_i32 = arith.constant 0 : i32
    %c0_i32_0 = arith.constant 0 : i32
    %c0_i32_1 = arith.constant 0 : i32
    return %c0_i32, %c0_i32_0 : i32, i32
  }
  func.func @transform_3(%arg0: i32) -> (i32, i32, i32) {
    %c0_i32 = arith.constant 0 : i32
    %c0_i32_0 = arith.constant 0 : i32
    %c0_i32_1 = arith.constant 0 : i32
    %c0_i32_2 = arith.constant 0 : i32
    return %c0_i32, %c0_i32_0, %c0_i32_1 : i32, i32, i32
  }
  func.func @transform_4(%arg0: i32) -> (i32, i32, i32, i32) {
    %c0_i32 = arith.constant 0 : i32
    %c0_i32_0 = arith.constant 0 : i32
    %c0_i32_1 = arith.constant 0 : i32
    %c0_i32_2 = arith.constant 0 : i32
    return %arg0, %c0_i32, %c0_i32_0, %c0_i32_1 : i32, i32, i32, i32
  }
  func.func @transform_5(%arg0: i32) -> (i32, i32, i32) {
    %c0_i32 = arith.constant 0 : i32
    %c0_i32_0 = arith.constant 0 : i32
    %c0_i32_1 = arith.constant 0 : i32
    return %arg0, %c0_i32, %c0_i32_0 : i32, i32, i32
  }
}

</mosaic_0001>

<llo_original>
// kernel: upsample_forward.1
$region0: #{upsample_forward.1}
  #allocation0 [shape = 'u32[]', space=smem, size = 0x4, offset = 0x4, fixed_abs, tag = 'smem constant byte address 0x4 - core index']
  #allocation1 [shape = 'u32[144,128]{1,0:T(1,128)}', space=vmem, size = 0x12000, scoped, tag = 'internal scratch']
  #allocation2 [shape = 'f32[4,18]{1,0:T(4,128)}', space=vmem, size = 0x800, scoped, tag = 'scratch operand']
  #allocation3 [shape = 'f32[12,16]{1,0:T(8,128)}', space=vmem, size = 0x2000, scoped, tag = 'scratch operand']
  #allocation4 [shape = 'f32[8,18]{1,0:T(8,128)}', space=vmem, size = 0x1000, scoped, tag = 'scratch operand']
  #allocation5 [shape = 'f32[16,16]{1,0:T(8,128)}', space=vmem, size = 0x2000, scoped, tag = 'scratch operand']
  %s0 = inlined_call_operand.vmem [shape: f32[2,4,16], index: 0, kind: input, shape index: {}]
  %s1 = inlined_call_operand.vmem [shape: f32[8,12], index: 1, kind: input, shape index: {}]
  %s2 = inlined_call_operand.vmem [shape: f32[8,1], index: 2, kind: input, shape index: {}]
  %s3 = inlined_call_operand.vmem [shape: f32[2,8,16], index: 3, kind: input, shape index: {}]
  %s4 = inlined_call_operand.vmem [shape: f32[2,2,8,16], index: 4, kind: output, shape index: {0}]
  %s5 = inlined_call_operand.vmem [shape: f32[2,8,2], index: 5, kind: output, shape index: {1}]
  %6 = xla_tuple %s4, %s5
  %s7 = sld [smem:[#allocation0]]
  $region57: #{upsample_forward.1} parent=0
    _
  %s9 = ssub.s32 1, %s7
  %s10 = scalar_select 0, %s9, %s7
  loop: start=0, step=1, limit=4
  $region2: #{upsample_forward.1} parent=0 // loop_pre_header
    _
  $region3: #{upsample_forward.1} parent=0 // loop_header
    %s12 = sphi 0, %s16
    %p13 = scmp.ge.s32.totalorder %s12, 4
    %s22 = sphi 0, %s24
    %s25 = sphi 0, %s22
    %s26 = sphi 0, %s25
    %s42 = sphi 0, %s26
    %s46 = sphi 0, %s46
    %s48 = sphi 0, %s46
    %s49 = sphi 0, %s48
    %s63 = sphi 0, %s49
    %s67 = sphi 0, %s67
    %s69 = sphi 0, %s67
    %s70 = sphi 0, %s69
    %s84 = sphi 0, %s70
    %s88 = sphi 0, %s88
    %s90 = sphi 0, %s88
    %s91 = sphi 0, %s90
    %s105 = sphi 0, %s91
    %s111 = sphi 0, %s113
    %s114 = sphi 0, %s111
    %s115 = sphi 0, %s114
    %s131 = sphi 0, %s115
    %s137 = sphi 0, %s139
    %s140 = sphi 0, %s137
    %s141 = sphi 0, %s140
    %s157 = sphi 0, %s141
  $region4: #{upsample_forward.1} parent=0 // loop_header_branch
    %15 = sbr.rel (%p13) target = $region8
  $region5: #{upsample_forward.1} parent=0 // loop_body
    %s17 = ssub.s32 %s12, 1
    %s18 = ssub.s32 %s12, 2
    %s19 = sadd.s32 %s12, 1
    %s20 = ssub.s32 %s12, %s19
    %p21 = scmp.eq.s32.totalorder %s20, 0
    %s23 = sadd.s32 %s22, 1
    %s24 = scalar_select %p21, %s22, %s23
    %p27 = pneg %p21
    %p28 = scmp.eq.s32.totalorder %s12, 1
    %p29 = por %p27, %p28
    %p30 = scmp.ne.s32.totalorder %s22, %s25
    %p31 = scmp.eq.s32.totalorder %s12, 0
    %p32 = por %p30, %p31
    %p33 = scmp.ne.s32.totalorder %s22, %s25
    %p34 = scmp.eq.s32.totalorder %s17, 1
    %p35 = por %p33, %p34
    %p36 = scmp.ne.s32.totalorder %s25, %s26
    %p37 = scmp.eq.s32.totalorder %s17, 0
    %p38 = por %p36, %p37
    %p39 = scmp.ne.s32.totalorder %s25, %s26
    %p40 = scmp.eq.s32.totalorder %s18, 1
    %p41 = por %p39, %p40
    %p43 = scmp.ne.s32.totalorder %s26, %s42
    %p44 = scmp.eq.s32.totalorder %s18, 0
    %p45 = por %p43, %p44
    %s47 = sadd.s32 %s46, 1
    %p50 = scmp.eq.s32.totalorder %s12, 1
    %p51 = scmp.ne.s32.totalorder %s46, %s48
    %p52 = scmp.eq.s32.totalorder %s12, 0
    %p53 = por %p51, %p52
    %p54 = scmp.ne.s32.totalorder %s46, %s48
    %p55 = scmp.eq.s32.totalorder %s17, 1
    %p56 = por %p54, %p55
    %p57 = scmp.ne.s32.totalorder %s48, %s49
    %p58 = scmp.eq.s32.totalorder %s17, 0
    %p59 = por %p57, %p58
    %p60 = scmp.ne.s32.totalorder %s48, %s49
    %p61 = scmp.eq.s32.totalorder %s18, 1
    %p62 = por %p60, %p61
    %p64 = scmp.ne.s32.totalorder %s49, %s63
    %p65 = scmp.eq.s32.totalorder %s18, 0
    %p66 = por %p64, %p65
    %s68 = sadd.s32 %s67, 1
    %p71 = scmp.eq.s32.totalorder %s12, 1
    %p72 = scmp.ne.s32.totalorder %s67, %s69
    %p73 = scmp.eq.s32.totalorder %s12, 0
    %p74 = por %p72, %p73
    %p75 = scmp.ne.s32.totalorder %s67, %s69
    %p76 = scmp.eq.s32.totalorder %s17, 1
    %p77 = por %p75, %p76
    %p78 = scmp.ne.s32.totalorder %s69, %s70
    %p79 = scmp.eq.s32.totalorder %s17, 0
    %p80 = por %p78, %p79
    %p81 = scmp.ne.s32.totalorder %s69, %s70
    %p82 = scmp.eq.s32.totalorder %s18, 1
    %p83 = por %p81, %p82
    %p85 = scmp.ne.s32.totalorder %s70, %s84
    %p86 = scmp.eq.s32.totalorder %s18, 0
    %p87 = por %p85, %p86
    %s89 = sadd.s32 %s88, 1
    %p92 = scmp.eq.s32.totalorder %s12, 1
    %p93 = scmp.ne.s32.totalorder %s88, %s90
    %p94 = scmp.eq.s32.totalorder %s12, 0
    %p95 = por %p93, %p94
    %p96 = scmp.ne.s32.totalorder %s88, %s90
    %p97 = scmp.eq.s32.totalorder %s17, 1
    %p98 = por %p96, %p97
    %p99 = scmp.ne.s32.totalorder %s90, %s91
    %p100 = scmp.eq.s32.totalorder %s17, 0
    %p101 = por %p99, %p100
    %p102 = scmp.ne.s32.totalorder %s90, %s91
    %p103 = scmp.eq.s32.totalorder %s18, 1
    %p104 = por %p102, %p103
    %p106 = scmp.ne.s32.totalorder %s91, %s105
    %p107 = scmp.eq.s32.totalorder %s18, 0
    %p108 = por %p106, %p107
    %s109 = ssub.s32 %s12, %s19
    %p110 = scmp.eq.s32.totalorder %s109, 0
    %s112 = sadd.s32 %s111, 1
    %s113 = scalar_select %p110, %s111, %s112
    %p116 = pneg %p110
    %p117 = scmp.eq.s32.totalorder %s12, 1
    %p118 = por %p116, %p117
    %p119 = scmp.ne.s32.totalorder %s111, %s114
    %p120 = scmp.eq.s32.totalorder %s12, 0
    %p121 = por %p119, %p120
    %p122 = scmp.ne.s32.totalorder %s111, %s114
    %p123 = scmp.eq.s32.totalorder %s17, 1
    %p124 = por %p122, %p123
    %p125 = scmp.ne.s32.totalorder %s114, %s115
    %p126 = scmp.eq.s32.totalorder %s17, 0
    %p127 = por %p125, %p126
    %p128 = scmp.ne.s32.totalorder %s114, %s115
    %p129 = scmp.eq.s32.totalorder %s18, 1
    %p130 = por %p128, %p129
    %p132 = scmp.ne.s32.totalorder %s115, %s131
    %p133 = scmp.eq.s32.totalorder %s18, 0
    %p134 = por %p132, %p133
    %s135 = ssub.s32 %s12, %s19
    %p136 = scmp.eq.s32.totalorder %s135, 0
    %s138 = sadd.s32 %s137, 1
    %s139 = scalar_select %p136, %s137, %s138
    %p142 = pneg %p136
    %p143 = scmp.eq.s32.totalorder %s12, 1
    %p144 = por %p142, %p143
    %p145 = scmp.ne.s32.totalorder %s137, %s140
    %p146 = scmp.eq.s32.totalorder %s12, 0
    %p147 = por %p145, %p146
    %p148 = scmp.ne.s32.totalorder %s137, %s140
    %p149 = scmp.eq.s32.totalorder %s17, 1
    %p150 = por %p148, %p149
    %p151 = scmp.ne.s32.totalorder %s140, %s141
    %p152 = scmp.eq.s32.totalorder %s17, 0
    %p153 = por %p151, %p152
    %p154 = scmp.ne.s32.totalorder %s140, %s141
    %p155 = scmp.eq.s32.totalorder %s18, 1
    %p156 = por %p154, %p155
    %p158 = scmp.ne.s32.totalorder %s141, %s157
    %p159 = scmp.eq.s32.totalorder %s18, 0
    %p160 = por %p158, %p159
    %p161 = scmp.le.s32.totalorder 1, %s12
    %p162 = scmp.lt.s32.totalorder %s12, 3
    %p163 = pnand %p161, %p162
    %p164 = pneg %p163
    // Predicated region
    $region9: #{upsample_forward.1} parent=5 // pred_check
      _
    $region10: #{upsample_forward.1} parent=5 // pred_check_branch
      %166 = sbr.rel (%p163) target = $region12
    $region11: #{upsample_forward.1} parent=5 // pred_region
      %s167 = ssub.s32 %s12, 1
      // Predicated region
      $region13: #{upsample_forward.1} parent=11 // pred_check
        %p168 = pneg %p59
      $region14: #{upsample_forward.1} parent=11 // pred_check_branch
        %170 = sbr.rel (%p168) target = $region16
      $region15: #{upsample_forward.1} parent=11 // pred_region
        _
      $region16: #{upsample_forward.1} parent=11 // pred_fallthru
        _
      // Predicated region
      $region17: #{upsample_forward.1} parent=11 // pred_check
        %p171 = pneg %p80
      $region18: #{upsample_forward.1} parent=11 // pred_check_branch
        %173 = sbr.rel (%p171) target = $region20
      $region19: #{upsample_forward.1} parent=11 // pred_region
        _
      $region20: #{upsample_forward.1} parent=11 // pred_fallthru
        _
      // Predicated region
      $region21: #{upsample_forward.1} parent=11 // pred_check
        %p174 = pneg %p101
      $region22: #{upsample_forward.1} parent=11 // pred_check_branch
        %176 = sbr.rel (%p174) target = $region24
      $region23: #{upsample_forward.1} parent=11 // pred_region
        _
      $region24: #{upsample_forward.1} parent=11 // pred_fallthru
        _
    $region12: #{upsample_forward.1} parent=5 // pred_fallthru
      _
    %p177 = scmp.lt.s32.totalorder %s12, 2
    // Predicated region
    $region25: #{upsample_forward.1} parent=5 // pred_check
      %p178 = pneg %p177
    $region26: #{upsample_forward.1} parent=5 // pred_check_branch
      %180 = sbr.rel (%p178) target = $region28
    $region27: #{upsample_forward.1} parent=5 // pred_region
      // Predicated region
      $region29: #{upsample_forward.1} parent=27 // pred_check
        %p181 = pneg %p32
      $region30: #{upsample_forward.1} parent=27 // pred_check_branch
        %183 = sbr.rel (%p181) target = $region32
      $region31: #{upsample_forward.1} parent=27 // pred_region
        %p184 = scmp.lt.s32.totalorder %s12, 1
        %s185 = scalar_select %p184, %s12, 1
        %s186 = smul.addr %s185, 4
        %s187 = scalar_lea.vmem %s0, %s186
      $region32: #{upsample_forward.1} parent=27 // pred_fallthru
        _
    $region28: #{upsample_forward.1} parent=5 // pred_fallthru
      _
    %p188 = scmp.le.s32.totalorder 1, %s12
    %p189 = scmp.lt.s32.totalorder %s12, 3
    %p190 = pnand %p188, %p189
    %p191 = pneg %p190
    // Predicated region
    $region33: #{upsample_forward.1} parent=5 // pred_check
      _
    $region34: #{upsample_forward.1} parent=5 // pred_check_branch
      %193 = sbr.rel (%p190) target = $region36
    $region35: #{upsample_forward.1} parent=5 // pred_region
      %s194 = ssub.s32 %s12, 1
      %p195 = scmp.lt.s32.totalorder %s17, 1
      %s196 = scalar_select %p195, %s17, 1
      %s197 = smul.addr %s196, 4
      %s198 = scalar_lea.vmem %s0, %s197
      %p199 = pneg %p38
      %p200 = pneg %p35
      %p201 = pneg %p59
      %p202 = pneg %p56
      %p203 = pneg %p80
      %p204 = pneg %p77
      %p205 = pneg %p101
      %p206 = pneg %p98
      %p207 = pneg %p127
      %p208 = pneg %p124
      %p209 = scmp.lt.s32.totalorder %s17, 1
      %s210 = scalar_select %p209, %s17, 1
      %s211 = smul.addr %s210, 2
      %s212 = smul.addr %s211, 8
      %s213 = scalar_lea.vmem %s4, %s212
      %p214 = pneg %p153
      %p215 = pneg %p150
      %p216 = scmp.lt.s32.totalorder %s17, 1
      %s217 = scalar_select %p216, %s17, 1
      %s218 = smul.addr %s217, 8
      %s219 = scalar_lea.vmem %s5, %s218
      %p220 = scmp.lt.s32.totalorder %s17, 1
      %s221 = scalar_select %p220, %s17, 1
      %s222 = smul.addr %s221, 4
      %s223 = scalar_lea.vmem %s0, %s222
      %p224 = scmp.lt.s32.totalorder %s17, 1
      %s225 = scalar_select %p224, %s17, 1
      %s226 = smul.addr %s225, 2
      %s227 = smul.addr %s226, 8
      %s228 = scalar_lea.vmem %s4, %s227
      %p229 = scmp.lt.s32.totalorder %s17, 1
      %s230 = scalar_select %p229, %s17, 1
      %s231 = smul.addr %s230, 8
      %s232 = scalar_lea.vmem %s5, %s231
      %vm233 = vcmask 142336
      %234 = vst.msk [vmem:[#allocation2] sm:$0xf] %vm233, 0.0
      %v235 = vld [vmem:[%s223] sm:$0xf]
      %237 = vrot.lane.b32.xlu0 %v235, 1
      %v238 = vpop.permute.xlu0 %237
      %vm240 = vcmask 134152
      %241 = vst.msk [vmem:[#allocation2] sm:$0xf] %vm240, %v238
      %v242 = vld [vmem:[#allocation2] sm:$0xf]
      %vm243 = vcmask 125952
      %244 = vst.msk [vmem:[#allocation3] sm:$0xf] %vm243, %v242
      %v245 = vld [vmem:[#allocation2] sm:$0xf]
      %247 = vrot.lane.b32.xlu0 %v245, 127
      %v248 = vpop.permute.xlu0 %247
      %250 = vst.msk [vmem:[#allocation3 + $0x4] sm:$0xf] %vm243, %v248
      %v251 = vld [vmem:[#allocation2] sm:$0xf]
      %253 = vrot.lane.b32.xlu0 %v251, 126
      %v254 = vpop.permute.xlu0 %253
      %256 = vst.msk [vmem:[#allocation3 + $0x8] sm:$0xf] %vm243, %v254
      %v257 = vld [vmem:[%s1] sm:$0xff]
      %v258 = vld [vmem:[#allocation3] sm:$0xff]
      %v259 = vld [vmem:[#allocation3 + $0x8] sm:$0xf]
      %v260 = vld [vmem:[%s2] sm:$0xff]
      %262 = vset.pattern.permute.xlu0 0
      %263 = vperm.xlu0 %262, %v260
      %v264 = vpop.permute.xlu0 %263
      %vm266 = vcmask 97280
      %v268 = vsel %vm266, %v257, 0
      %vm270 = vcmask 1043456
      %v272 = vsel %vm270, %v259, 0
      %274 = vmatprep.subr.mxu0 0.0
      %275 = vmatpush1.msra.mxu0 %v258
      %276 = vmatprep.subr.mxu0 0.0
      %277 = vmatpush1.msra.mxu0 %v272
      %278 = vmatprep.subr.mxu0 0.0
      %279 = vmatpush1.msra.mxu0 0.0
      %280 = vmatprep.subr.mxu0 0.0
      %281 = vmatpush1.msra.mxu0 0.0
      %282 = vmatprep.subr.mxu0 0.0
      %283 = vmatpush1.msra.mxu0 0.0
      %284 = vmatprep.subr.mxu0 0.0
      %285 = vmatpush1.msra.mxu0 0.0
      %286 = vmatprep.subr.mxu0 0.0
      %287 = vmatpush1.msra.mxu0 0.0
      %288 = vmatprep.subr.mxu0 0.0
      %289 = vmatpush1.msra.mxu0 0.0
      %290 = vmatprep.subr.mxu0 0.0
      %291 = vmatpush1.msra.mxu0 0.0
      %292 = vmatprep.subr.mxu0 0.0
      %293 = vmatpush1.msra.mxu0 0.0
      %294 = vmatprep.subr.mxu0 0.0
      %295 = vmatpush1.msra.mxu0 0.0
      %296 = vmatprep.subr.mxu0 0.0
      %297 = vmatpush1.msra.mxu0 0.0
      %298 = vmatprep.subr.mxu0 0.0
      %299 = vmatpush1.msra.mxu0 0.0
      %300 = vmatprep.subr.mxu0 0.0
      %301 = vmatpush1.msra.mxu0 0.0
      %302 = vmatprep.subr.mxu0 0.0
      %303 = vmatpush1.msra.mxu0 0.0
      %304 = vmatprep.subr.mxu0 0.0
      %305 = vmatpush1.msra.mxu0 0.0
      %306 = vmatprep.subr.mxu0 0.0
      %307 = vmatpush1.msra.mxu0 0.0
      %308 = vmatprep.subr.mxu0 0.0
      %309 = vmatpush1.msra.mxu0 0.0
      %310 = vmatprep.subr.mxu0 0.0
      %311 = vmatpush1.msra.mxu0 0.0
      %312 = vmatprep.subr.mxu0 0.0
      %313 = vmatpush1.msra.mxu0 0.0
      %314 = vmatprep.subr.mxu0 0.0
      %315 = vmatpush1.msra.mxu0 0.0
      %316 = vmatprep.subr.mxu0 0.0
      %317 = vmatpush1.msra.mxu0 0.0
      %318 = vmatprep.subr.mxu0 0.0
      %319 = vmatpush1.msra.mxu0 0.0
      %320 = vmatprep.subr.mxu0 0.0
      %321 = vmatpush1.msra.mxu0 0.0
      %322 = vmatprep.subr.mxu0 0.0
      %323 = vmatpush1.msra.mxu0 0.0
      %324 = vmatprep.subr.mxu0 0.0
      %325 = vmatpush1.msra.mxu0 0.0
      %326 = vmatprep.subr.mxu0 0.0
      %327 = vmatpush1.msra.mxu0 0.0
      %328 = vmatprep.subr.mxu0 0.0
      %329 = vmatpush1.msra.mxu0 0.0
      %330 = vmatprep.subr.mxu0 0.0
      %331 = vmatpush1.msra.mxu0 0.0
      %332 = vmatprep.subr.mxu0 0.0
      %333 = vmatpush1.msra.mxu0 0.0
      %334 = vmatprep.subr.mxu0 0.0
      %335 = vmatpush1.msra.mxu0 0.0
      %336 = vmatprep.subr.mxu0 0.0
      %337 = vmatpush1.msra.mxu0 0.0
      %338 = vmatprep.mubr.f32.mxu0 0.0
      %339 = vmatmul.mubr.f32.gmra.mrb[0].mxu0 %v268
      %v340 = vpop.f32.mrb[0].mxu0
      %v341 = vadd.f32 %v264, %v340
      %v342 = vpop.f32.mrb[0].mxu0
      %343 = vdwg.mxu0
      %vm344 = vcmask 146432
      %345 = vst.msk [vmem:[#allocation4] sm:$0xff] %vm344, 0.0
      %347 = vrot.lane.b32.xlu0 %v341, 1
      %v348 = vpop.permute.xlu0 %347
      %vm350 = vcmask 138248
      %351 = vst.msk [vmem:[#allocation4] sm:$0xff] %vm350, %v348
      %v352 = vld [vmem:[#allocation4] sm:$0xff]
      %vm353 = vcmask 130048
      %354 = vst.msk [vmem:[#allocation5] sm:$0xff] %vm353, %v352
      %v355 = vld [vmem:[#allocation4] sm:$0xff]
      %357 = vrot.lane.b32.xlu0 %v355, 127
      %v358 = vpop.permute.xlu0 %357
      %360 = vst.msk [vmem:[#allocation5 + $0x8] sm:$0xff] %vm353, %v358
      %v361 = vld [vmem:[%s3] sm:$0xff]
      %v362 = vld [vmem:[#allocation5] sm:$0xff]
      %v363 = vld [vmem:[#allocation5 + $0x8] sm:$0xff]
      %v365 = vsel %vm353, %v361, 0
      %367 = vmatprep.subr.mxu0 0.0
      %368 = vmatpush1.msra.mxu0 %v362
      %369 = vmatprep.subr.mxu0 0.0
      %370 = vmatpush1.msra.mxu0 %v363
      %371 = vmatprep.subr.mxu0 0.0
      %372 = vmatpush1.msra.mxu0 0.0
      %373 = vmatprep.subr.mxu0 0.0
      %374 = vmatpush1.msra.mxu0 0.0
      %375 = vmatprep.subr.mxu0 0.0
      %376 = vmatpush1.msra.mxu0 0.0
      %377 = vmatprep.subr.mxu0 0.0
      %378 = vmatpush1.msra.mxu0 0.0
      %379 = vmatprep.subr.mxu0 0.0
      %380 = vmatpush1.msra.mxu0 0.0
      %381 = vmatprep.subr.mxu0 0.0
      %382 = vmatpush1.msra.mxu0 0.0
      %383 = vmatprep.subr.mxu0 0.0
      %384 = vmatpush1.msra.mxu0 0.0
      %385 = vmatprep.subr.mxu0 0.0
      %386 = vmatpush1.msra.mxu0 0.0
      %387 = vmatprep.subr.mxu0 0.0
      %388 = vmatpush1.msra.mxu0 0.0
      %389 = vmatprep.subr.mxu0 0.0
      %390 = vmatpush1.msra.mxu0 0.0
      %391 = vmatprep.subr.mxu0 0.0
      %392 = vmatpush1.msra.mxu0 0.0
      %393 = vmatprep.subr.mxu0 0.0
      %394 = vmatpush1.msra.mxu0 0.0
      %395 = vmatprep.subr.mxu0 0.0
      %396 = vmatpush1.msra.mxu0 0.0
      %397 = vmatprep.subr.mxu0 0.0
      %398 = vmatpush1.msra.mxu0 0.0
      %399 = vmatprep.subr.mxu0 0.0
      %400 = vmatpush1.msra.mxu0 0.0
      %401 = vmatprep.subr.mxu0 0.0
      %402 = vmatpush1.msra.mxu0 0.0
      %403 = vmatprep.subr.mxu0 0.0
      %404 = vmatpush1.msra.mxu0 0.0
      %405 = vmatprep.subr.mxu0 0.0
      %406 = vmatpush1.msra.mxu0 0.0
      %407 = vmatprep.subr.mxu0 0.0
      %408 = vmatpush1.msra.mxu0 0.0
      %409 = vmatprep.subr.mxu0 0.0
      %410 = vmatpush1.msra.mxu0 0.0
      %411 = vmatprep.subr.mxu0 0.0
      %412 = vmatpush1.msra.mxu0 0.0
      %413 = vmatprep.subr.mxu0 0.0
      %414 = vmatpush1.msra.mxu0 0.0
      %415 = vmatprep.subr.mxu0 0.0
      %416 = vmatpush1.msra.mxu0 0.0
      %417 = vmatprep.subr.mxu0 0.0
      %418 = vmatpush1.msra.mxu0 0.0
      %419 = vmatprep.subr.mxu0 0.0
      %420 = vmatpush1.msra.mxu0 0.0
      %421 = vmatprep.subr.mxu0 0.0
      %422 = vmatpush1.msra.mxu0 0.0
      %423 = vmatprep.subr.mxu0 0.0
      %424 = vmatpush1.msra.mxu0 0.0
      %425 = vmatprep.subr.mxu0 0.0
      %426 = vmatpush1.msra.mxu0 0.0
      %427 = vmatprep.subr.mxu0 0.0
      %428 = vmatpush1.msra.mxu0 0.0
      %429 = vmatprep.subr.mxu0 0.0
      %430 = vmatpush1.msra.mxu0 0.0
      %431 = vmatprep.mubr.f32.mxu0 0.0
      %432 = vmatmul.mubr.f32.gmra.mrb[0].mxu0 %v365
      %v433 = vpop.f32.mrb[0].mxu0
      %v434 = vadd.f32 0.0, %v433
      %v435 = vpop.f32.mrb[0].mxu0
      %436 = vdwg.mxu0
      %437 = vst.msk [vmem:[%s228] sm:$0xff] %vm353, %v434
      %v438 = vsel %vm353, %v434, 0.0
      %439 = vadd.xlane.f32.xlu0 %v438
      %v440 = vpop.xlane.xlu0 %439
      %v441 = vadd.f32 %v440, 0.0
      %v442 = vmul.f32 %v434, %v434
      %v443 = vsel %vm353, %v442, 0.0
      %444 = vadd.xlane.f32.xlu0 %v443
      %v445 = vpop.xlane.xlu0 %444
      %v446 = vadd.f32 %v445, 0.0
      %v447 = vld [vmem:[#allocation4] sm:$0xff]
      %449 = vrot.lane.b32.xlu0 %v447, 127
      %v450 = vpop.permute.xlu0 %449
      %452 = vst.msk [vmem:[#allocation5] sm:$0xff] %vm353, %v450
      %v453 = vld [vmem:[#allocation4] sm:$0xff]
      %455 = vrot.lane.b32.xlu0 %v453, 126
      %v456 = vpop.permute.xlu0 %455
      %458 = vst.msk [vmem:[#allocation5 + $0x8] sm:$0xff] %vm353, %v456
      %s459 = scalar_lea.vmem %s3, 8
      %v460 = vld [vmem:[%s459] sm:$0xff]
      %v461 = vld [vmem:[#allocation5] sm:$0xff]
      %v462 = vld [vmem:[#allocation5 + $0x8] sm:$0xff]
      %v464 = vsel %vm353, %v460, 0
      %466 = vmatprep.subr.mxu0 0.0
      %467 = vmatpush1.msra.mxu0 %v461
      %468 = vmatprep.subr.mxu0 0.0
      %469 = vmatpush1.msra.mxu0 %v462
      %470 = vmatprep.subr.mxu0 0.0
      %471 = vmatpush1.msra.mxu0 0.0
      %472 = vmatprep.subr.mxu0 0.0
      %473 = vmatpush1.msra.mxu0 0.0
      %474 = vmatprep.subr.mxu0 0.0
      %475 = vmatpush1.msra.mxu0 0.0
      %476 = vmatprep.subr.mxu0 0.0
      %477 = vmatpush1.msra.mxu0 0.0
      %478 = vmatprep.subr.mxu0 0.0
      %479 = vmatpush1.msra.mxu0 0.0
      %480 = vmatprep.subr.mxu0 0.0
      %481 = vmatpush1.msra.mxu0 0.0
      %482 = vmatprep.subr.mxu0 0.0
      %483 = vmatpush1.msra.mxu0 0.0
      %484 = vmatprep.subr.mxu0 0.0
      %485 = vmatpush1.msra.mxu0 0.0
      %486 = vmatprep.subr.mxu0 0.0
      %487 = vmatpush1.msra.mxu0 0.0
      %488 = vmatprep.subr.mxu0 0.0
      %489 = vmatpush1.msra.mxu0 0.0
      %490 = vmatprep.subr.mxu0 0.0
      %491 = vmatpush1.msra.mxu0 0.0
      %492 = vmatprep.subr.mxu0 0.0
      %493 = vmatpush1.msra.mxu0 0.0
      %494 = vmatprep.subr.mxu0 0.0
      %495 = vmatpush1.msra.mxu0 0.0
      %496 = vmatprep.subr.mxu0 0.0
      %497 = vmatpush1.msra.mxu0 0.0
      %498 = vmatprep.subr.mxu0 0.0
      %499 = vmatpush1.msra.mxu0 0.0
      %500 = vmatprep.subr.mxu0 0.0
      %501 = vmatpush1.msra.mxu0 0.0
      %502 = vmatprep.subr.mxu0 0.0
      %503 = vmatpush1.msra.mxu0 0.0
      %504 = vmatprep.subr.mxu0 0.0
      %505 = vmatpush1.msra.mxu0 0.0
      %506 = vmatprep.subr.mxu0 0.0
      %507 = vmatpush1.msra.mxu0 0.0
      %508 = vmatprep.subr.mxu0 0.0
      %509 = vmatpush1.msra.mxu0 0.0
      %510 = vmatprep.subr.mxu0 0.0
      %511 = vmatpush1.msra.mxu0 0.0
      %512 = vmatprep.subr.mxu0 0.0
      %513 = vmatpush1.msra.mxu0 0.0
      %514 = vmatprep.subr.mxu0 0.0
      %515 = vmatpush1.msra.mxu0 0.0
      %516 = vmatprep.subr.mxu0 0.0
      %517 = vmatpush1.msra.mxu0 0.0
      %518 = vmatprep.subr.mxu0 0.0
      %519 = vmatpush1.msra.mxu0 0.0
      %520 = vmatprep.subr.mxu0 0.0
      %521 = vmatpush1.msra.mxu0 0.0
      %522 = vmatprep.subr.mxu0 0.0
      %523 = vmatpush1.msra.mxu0 0.0
      %524 = vmatprep.subr.mxu0 0.0
      %525 = vmatpush1.msra.mxu0 0.0
      %526 = vmatprep.subr.mxu0 0.0
      %527 = vmatpush1.msra.mxu0 0.0
      %528 = vmatprep.subr.mxu0 0.0
      %529 = vmatpush1.msra.mxu0 0.0
      %530 = vmatprep.mubr.f32.mxu0 0.0
      %531 = vmatmul.mubr.f32.gmra.mrb[0].mxu0 %v464
      %v532 = vpop.f32.mrb[0].mxu0
      %v533 = vadd.f32 0.0, %v532
      %v534 = vpop.f32.mrb[0].mxu0
      %535 = vdwg.mxu0
      %s536 = scalar_lea.vmem %s228, 8
      %537 = vst.msk [vmem:[%s536] sm:$0xff] %vm353, %v533
      %v538 = vsel %vm353, %v533, 0.0
      %539 = vadd.xlane.f32.xlu0 %v538
      %v540 = vpop.xlane.xlu0 %539
      %v541 = vadd.f32 %v441, %v540
      %v542 = vmul.f32 %v533, %v533
      %v543 = vsel %vm353, %v542, 0.0
      %544 = vadd.xlane.f32.xlu0 %v543
      %v545 = vpop.xlane.xlu0 %544
      %v546 = vadd.f32 %v446, %v545
      %vm547 = vcmask 7168
      %548 = vst.msk [vmem:[%s232] sm:$0xff] %vm547, %v541
      %vm549 = vcmask 15368
      %550 = vst.msk [vmem:[%s232] sm:$0xff] %vm549, %v546
      %p551 = scmp.lt.s32.totalorder %s17, 1
      %s552 = scalar_select %p551, %s17, 1
      %s553 = smul.addr %s552, 2
      %s554 = smul.addr %s553, 8
      %s555 = scalar_lea.vmem %s4, %s554
      %p556 = scmp.lt.s32.totalorder %s17, 1
      %s557 = scalar_select %p556, %s17, 1
      %s558 = smul.addr %s557, 8
      %s559 = scalar_lea.vmem %s5, %s558
      // Predicated region
      $region37: #{upsample_forward.1} parent=35 // pred_check
        %p560 = pneg %p124
      $region38: #{upsample_forward.1} parent=35 // pred_check_branch
        %562 = sbr.rel (%p560) target = $region40
      $region39: #{upsample_forward.1} parent=35 // pred_region
        _
      $region40: #{upsample_forward.1} parent=35 // pred_fallthru
        _
      // Predicated region
      $region41: #{upsample_forward.1} parent=35 // pred_check
        %p563 = pneg %p150
      $region42: #{upsample_forward.1} parent=35 // pred_check_branch
        %565 = sbr.rel (%p563) target = $region44
      $region43: #{upsample_forward.1} parent=35 // pred_region
        _
      $region44: #{upsample_forward.1} parent=35 // pred_fallthru
        _
    $region36: #{upsample_forward.1} parent=5 // pred_fallthru
      _
    %p566 = scmp.le.s32.totalorder 2, %s12
    // Predicated region
    $region45: #{upsample_forward.1} parent=5 // pred_check
      %p567 = pneg %p566
    $region46: #{upsample_forward.1} parent=5 // pred_check_branch
      %569 = sbr.rel (%p567) target = $region48
    $region47: #{upsample_forward.1} parent=5 // pred_region
      %s570 = ssub.s32 %s12, 2
      // Predicated region
      $region49: #{upsample_forward.1} parent=47 // pred_check
        %p571 = pneg %p130
      $region50: #{upsample_forward.1} parent=47 // pred_check_branch
        %573 = sbr.rel (%p571) target = $region52
      $region51: #{upsample_forward.1} parent=47 // pred_region
        %p574 = scmp.lt.s32.totalorder %s18, 1
        %s575 = scalar_select %p574, %s18, 1
        %s576 = smul.addr %s575, 2
        %s577 = smul.addr %s576, 8
        %s578 = scalar_lea.vmem %s4, %s577
      $region52: #{upsample_forward.1} parent=47 // pred_fallthru
        _
      // Predicated region
      $region53: #{upsample_forward.1} parent=47 // pred_check
        %p579 = pneg %p156
      $region54: #{upsample_forward.1} parent=47 // pred_check_branch
        %581 = sbr.rel (%p579) target = $region56
      $region55: #{upsample_forward.1} parent=47 // pred_region
        %p582 = scmp.lt.s32.totalorder %s18, 1
        %s583 = scalar_select %p582, %s18, 1
        %s584 = smul.addr %s583, 8
        %s585 = scalar_lea.vmem %s5, %s584
      $region56: #{upsample_forward.1} parent=47 // pred_fallthru
        _
    $region48: #{upsample_forward.1} parent=5 // pred_fallthru
      _
  $region6: #{upsample_forward.1} parent=0 // loop_footer
    %s16 = sadd.s32 1, %s12
  $region7: #{upsample_forward.1} parent=0 // loop_footer_branch
    %11 = sbr.rel target = $region3
  $region8: #{upsample_forward.1} parent=0 // loop_exit
    _

</llo_original>
